<compile_context>
chip_gen: v5e
topology: v5e:2x2
jax: 0.10.0
libtpu: 0.0.40
codegen_flags: <defaults>
</compile_context>

<pallas_src>
import functools
import math

import jax
import jax.numpy as jnp
from jax.experimental import pallas as pl
from jax.experimental.pallas import tpu as pltpu


def _round_up(x, m):
    return ((x + m - 1) // m) * m


def _solid_linear_kernel(x_ref, wt_ref, o_ref, max_acc, min_acc, *, tk):
    """One (batch-tile, out-tile) block; grid axis 2 walks the K reduction.

    x_ref : (tb, tk)  X tile    (batch on sublanes, K chunk on lanes)
    wt_ref: (tk, to)  W^T tile  (K chunk on sublanes, out_features on lanes)
    o_ref : (tb, to)  output tile (lane-dense, resident across K steps)
    max_acc / min_acc : (tb, to) f32 running max / min accumulators (VMEM)
    """
    k_step = pl.program_id(2)

    @pl.when(k_step == 0)
    def _init():
        max_acc[...] = jnp.full(max_acc.shape, -jnp.inf, dtype=max_acc.dtype)
        min_acc[...] = jnp.full(min_acc.shape, jnp.inf, dtype=min_acc.dtype)

    x = x_ref[...].astype(jnp.float32)        # (tb, tk)
    mx = max_acc[...]
    mn = min_acc[...]
    # Statically unrolled running min/max over the K chunk: per column one
    # (tb, to) broadcast add + max + min on the VPU.  No 3-D intermediate.
    for k in range(tk):
        wk = wt_ref[k:k + 1, :].astype(jnp.float32)   # (1, to) sublane slice
        s = x[:, k:k + 1] + wk                         # (tb, to)
        mx = jnp.maximum(mx, s)
        mn = jnp.minimum(mn, s)
    max_acc[...] = mx
    min_acc[...] = mn

    @pl.when(k_step == pl.num_programs(2) - 1)
    def _finalize():
        o_ref[...] = (max_acc[...] + min_acc[...]).astype(o_ref.dtype)


def solid_linear(x, w, *, tb=None, to=None, tk=None):
    """Y[b, o] = min_i(X[b,i] + W[o,i]) + max_i(X[b,i] + W[o,i])."""
    B, K = x.shape
    O, Kw = w.shape
    assert K == Kw, "in_features mismatch"
    out_dtype = jnp.result_type(x.dtype, w.dtype)

    # ---- tile selection (sized to keep the per-iteration accumulators in
    #      vregs: 2 x (tb*to) f32 must stay well under the 64-vreg budget) ----
    if tb is None:
        tb = min(128, _round_up(B, 8))            # batch tile (sublanes)
    if to is None:
        to = min(128, _round_up(O, 128))          # out_features tile (lanes)
    if tk is None:
        tk = _round_up(K, 8) if K <= 128 else 128  # K chunk per grid step

    Bp = _round_up(B, tb)
    Op = _round_up(O, to)
    Kp = _round_up(K, tk)

    # ---- padding (one-time, outside the kernel) ----------------------------
    # K: edge replication -> padded sums duplicate an existing sum (exact).
    # B / O: padded rows / columns are sliced away below.
    x_p = jnp.pad(x, ((0, Bp - B), (0, Kp - K)), mode="edge")
    wt_p = jnp.pad(w.T, ((0, Kp - K), (0, Op - O)), mode="edge")   # (Kp, Op)

    grid = (Bp // tb, Op // to, Kp // tk)

    y_p = pl.pallas_call(
        functools.partial(_solid_linear_kernel, tk=tk),
        out_shape=jax.ShapeDtypeStruct((Bp, Op), out_dtype),
        grid=grid,
        in_specs=[
            pl.BlockSpec((tb, tk), lambda i, j, k: (i, k)),   # X tile
            pl.BlockSpec((tk, to), lambda i, j, k: (k, j)),   # W^T tile
        ],
        out_specs=pl.BlockSpec((tb, to), lambda i, j, k: (i, j)),
        scratch_shapes=[
            pltpu.VMEM((tb, to), jnp.float32),   # running max
            pltpu.VMEM((tb, to), jnp.float32),   # running min
        ],
        compiler_params=pltpu.CompilerParams(
            dimension_semantics=("parallel", "parallel", "arbitrary"),
        ),
    )(x_p, wt_p)

    return y_p[:B, :O]


def init_params(key, in_features, out_features, init_std=None):
    """Deterministic W init matching the PyTorch __init__."""
    if init_std:
        return init_std * jax.random.normal(
            key, (out_features, in_features), jnp.float32)
    # xavier_uniform_: U(-a, a), a = sqrt(6 / (fan_in + fan_out))
    a = math.sqrt(6.0 / (in_features + out_features))
    return jax.random.uniform(key, (out_features, in_features), jnp.float32,
                              minval=-a, maxval=a)


def reference_forward(x, w):
    """Pure-JAX reference: min_i(X+W) + max_i(X+W)."""
    s = x[:, None, :] + w[None, :, :]
    return jnp.min(s, axis=-1) + jnp.max(s, axis=-1)


if __name__ == "__main__":
    key = jax.random.PRNGKey(0)
    k_w1, k_x1, k_w2, k_x2 = jax.random.split(key, 4)

    # Test 1: small shapes (single grid step, O padded up to a lane-dense 128).
    batch, in_features, out_features = 16, 32, 24
    w1 = init_params(k_w1, in_features, out_features)
    x1 = jax.random.normal(k_x1, (batch, in_features), jnp.float32)
    y1 = jax.block_until_ready(solid_linear(x1, w1))
    assert y1.shape == (batch, out_features)
    assert jnp.allclose(y1, reference_forward(x1, w1), atol=1e-5, rtol=1e-5), \
        "mismatch vs reference (test 1)"

    # Test 2: K > 128 exercises the multi-step K reduction + K edge padding.
    batch2, in2, out2 = 8, 150, 40
    w2 = init_params(k_w2, in2, out2)
    x2 = jax.random.normal(k_x2, (batch2, in2), jnp.float32)
    y2 = jax.block_until_ready(solid_linear(x2, w2))
    assert y2.shape == (batch2, out2)
    assert jnp.allclose(y2, reference_forward(x2, w2), atol=1e-5, rtol=1e-5), \
        "mismatch vs reference (test 2)"

    print("KERNEL_OK")
</pallas_src>

<mosaic_0001>
module attributes {stable_mosaic.version = 11 : i64} {
  func.func @_solid_linear_kernel(%arg0: i32, %arg1: i32, %arg2: i32, %arg3: memref<16x32xf32, #tpu.memory_space<vmem>>, %arg4: memref<32x128xf32, #tpu.memory_space<vmem>>, %arg5: memref<16x128xf32, #tpu.memory_space<vmem>>, %arg6: memref<16x128xf32, #tpu.memory_space<vmem>>, %arg7: memref<16x128xf32, #tpu.memory_space<vmem>>) attributes {dimension_semantics = [#tpu.dimension_semantics<parallel>, #tpu.dimension_semantics<parallel>, #tpu.dimension_semantics<arbitrary>], iteration_bounds = array<i64: 1, 1, 1>, scalar_prefetch = 0 : i64, scratch_operands = 2 : i64, tpu.core_type = #tpu.core_type<tc>, window_params = [{transform_indices = @transform_0, window_bounds = array<i64: 16, 32>}, {transform_indices = @transform_1, window_bounds = array<i64: 32, 128>}, {transform_indices = @transform_2, window_bounds = array<i64: 16, 128>}]} {
    %c0_i32 = arith.constant 0 : i32
    %0 = arith.cmpi eq, %arg2, %c0_i32 : i32
    %1 = arith.extui %0 : i1 to i32
    %c0_i32_0 = arith.constant 0 : i32
    %2 = arith.cmpi ne, %1, %c0_i32_0 : i32
    scf.if %2 {
      %cst = arith.constant 0xFF800000 : f32
      %235 = vector.broadcast %cst : f32 to vector<16x128xf32>
      %c0_45 = arith.constant 0 : index
      %c0_46 = arith.constant 0 : index
      %236 = vector.load %arg6[%c0_45, %c0_46] : memref<16x128xf32, #tpu.memory_space<vmem>>, vector<16x128xf32>
      tpu.vector_store %arg6[%c0_45, %c0_46], %235 {strides = array<i32>} : memref<16x128xf32, #tpu.memory_space<vmem>>, vector<16x128xf32>,
      %cst_47 = arith.constant 0x7F800000 : f32
      %237 = vector.broadcast %cst_47 : f32 to vector<16x128xf32>
      %c0_48 = arith.constant 0 : index
      %c0_49 = arith.constant 0 : index
      %238 = vector.load %arg7[%c0_48, %c0_49] : memref<16x128xf32, #tpu.memory_space<vmem>>, vector<16x128xf32>
      tpu.vector_store %arg7[%c0_48, %c0_49], %237 {strides = array<i32>} : memref<16x128xf32, #tpu.memory_space<vmem>>, vector<16x128xf32>,
    } else {
    }
    %c0 = arith.constant 0 : index
    %c0_1 = arith.constant 0 : index
    %3 = vector.load %arg3[%c0, %c0_1] : memref<16x32xf32, #tpu.memory_space<vmem>>, vector<16x32xf32>
    %c0_2 = arith.constant 0 : index
    %c0_3 = arith.constant 0 : index
    %4 = vector.load %arg6[%c0_2, %c0_3] : memref<16x128xf32, #tpu.memory_space<vmem>>, vector<16x128xf32>
    %c0_4 = arith.constant 0 : index
    %c0_5 = arith.constant 0 : index
    %5 = vector.load %arg7[%c0_4, %c0_5] : memref<16x128xf32, #tpu.memory_space<vmem>>, vector<16x128xf32>
    %c0_6 = arith.constant 0 : index
    %c0_7 = arith.constant 0 : index
    %6 = vector.load %arg4[%c0_6, %c0_7] : memref<32x128xf32, #tpu.memory_space<vmem>>, vector<1x128xf32>
    %7 = vector.extract_strided_slice %3 {offsets = [0, 0], sizes = [16, 1], strides = [1, 1]} : vector<16x32xf32> to vector<16x1xf32>
    %8 = vector.broadcast %7 : vector<16x1xf32> to vector<16x128xf32>
    %9 = vector.broadcast %6 : vector<1x128xf32> to vector<16x128xf32>
    %10 = arith.addf %8, %9 : vector<16x128xf32>
    %11 = arith.maximumf %4, %10 : vector<16x128xf32>
    %12 = arith.minimumf %5, %10 : vector<16x128xf32>
    %c1 = arith.constant 1 : index
    %c0_8 = arith.constant 0 : index
    %13 = vector.load %arg4[%c1, %c0_8] : memref<32x128xf32, #tpu.memory_space<vmem>>, vector<1x128xf32>
    %14 = vector.extract_strided_slice %3 {offsets = [0, 1], sizes = [16, 1], strides = [1, 1]} : vector<16x32xf32> to vector<16x1xf32>
    %15 = vector.broadcast %14 : vector<16x1xf32> to vector<16x128xf32>
    %16 = vector.broadcast %13 : vector<1x128xf32> to vector<16x128xf32>
    %17 = arith.addf %15, %16 : vector<16x128xf32>
    %18 = arith.maximumf %11, %17 : vector<16x128xf32>
    %19 = arith.minimumf %12, %17 : vector<16x128xf32>
    %c2 = arith.constant 2 : index
    %c0_9 = arith.constant 0 : index
    %20 = vector.load %arg4[%c2, %c0_9] : memref<32x128xf32, #tpu.memory_space<vmem>>, vector<1x128xf32>
    %21 = vector.extract_strided_slice %3 {offsets = [0, 2], sizes = [16, 1], strides = [1, 1]} : vector<16x32xf32> to vector<16x1xf32>
    %22 = vector.broadcast %21 : vector<16x1xf32> to vector<16x128xf32>
    %23 = vector.broadcast %20 : vector<1x128xf32> to vector<16x128xf32>
    %24 = arith.addf %22, %23 : vector<16x128xf32>
    %25 = arith.maximumf %18, %24 : vector<16x128xf32>
    %26 = arith.minimumf %19, %24 : vector<16x128xf32>
    %c3 = arith.constant 3 : index
    %c0_10 = arith.constant 0 : index
    %27 = vector.load %arg4[%c3, %c0_10] : memref<32x128xf32, #tpu.memory_space<vmem>>, vector<1x128xf32>
    %28 = vector.extract_strided_slice %3 {offsets = [0, 3], sizes = [16, 1], strides = [1, 1]} : vector<16x32xf32> to vector<16x1xf32>
    %29 = vector.broadcast %28 : vector<16x1xf32> to vector<16x128xf32>
    %30 = vector.broadcast %27 : vector<1x128xf32> to vector<16x128xf32>
    %31 = arith.addf %29, %30 : vector<16x128xf32>
    %32 = arith.maximumf %25, %31 : vector<16x128xf32>
    %33 = arith.minimumf %26, %31 : vector<16x128xf32>
    %c4 = arith.constant 4 : index
    %c0_11 = arith.constant 0 : index
    %34 = vector.load %arg4[%c4, %c0_11] : memref<32x128xf32, #tpu.memory_space<vmem>>, vector<1x128xf32>
    %35 = vector.extract_strided_slice %3 {offsets = [0, 4], sizes = [16, 1], strides = [1, 1]} : vector<16x32xf32> to vector<16x1xf32>
    %36 = vector.broadcast %35 : vector<16x1xf32> to vector<16x128xf32>
    %37 = vector.broadcast %34 : vector<1x128xf32> to vector<16x128xf32>
    %38 = arith.addf %36, %37 : vector<16x128xf32>
    %39 = arith.maximumf %32, %38 : vector<16x128xf32>
    %40 = arith.minimumf %33, %38 : vector<16x128xf32>
    %c5 = arith.constant 5 : index
    %c0_12 = arith.constant 0 : index
    %41 = vector.load %arg4[%c5, %c0_12] : memref<32x128xf32, #tpu.memory_space<vmem>>, vector<1x128xf32>
    %42 = vector.extract_strided_slice %3 {offsets = [0, 5], sizes = [16, 1], strides = [1, 1]} : vector<16x32xf32> to vector<16x1xf32>
    %43 = vector.broadcast %42 : vector<16x1xf32> to vector<16x128xf32>
    %44 = vector.broadcast %41 : vector<1x128xf32> to vector<16x128xf32>
    %45 = arith.addf %43, %44 : vector<16x128xf32>
    %46 = arith.maximumf %39, %45 : vector<16x128xf32>
    %47 = arith.minimumf %40, %45 : vector<16x128xf32>
    %c6 = arith.constant 6 : index
    %c0_13 = arith.constant 0 : index
    %48 = vector.load %arg4[%c6, %c0_13] : memref<32x128xf32, #tpu.memory_space<vmem>>, vector<1x128xf32>
    %49 = vector.extract_strided_slice %3 {offsets = [0, 6], sizes = [16, 1], strides = [1, 1]} : vector<16x32xf32> to vector<16x1xf32>
    %50 = vector.broadcast %49 : vector<16x1xf32> to vector<16x128xf32>
    %51 = vector.broadcast %48 : vector<1x128xf32> to vector<16x128xf32>
    %52 = arith.addf %50, %51 : vector<16x128xf32>
    %53 = arith.maximumf %46, %52 : vector<16x128xf32>
    %54 = arith.minimumf %47, %52 : vector<16x128xf32>
    %c7 = arith.constant 7 : index
    %c0_14 = arith.constant 0 : index
    %55 = vector.load %arg4[%c7, %c0_14] : memref<32x128xf32, #tpu.memory_space<vmem>>, vector<1x128xf32>
    %56 = vector.extract_strided_slice %3 {offsets = [0, 7], sizes = [16, 1], strides = [1, 1]} : vector<16x32xf32> to vector<16x1xf32>
    %57 = vector.broadcast %56 : vector<16x1xf32> to vector<16x128xf32>
    %58 = vector.broadcast %55 : vector<1x128xf32> to vector<16x128xf32>
    %59 = arith.addf %57, %58 : vector<16x128xf32>
    %60 = arith.maximumf %53, %59 : vector<16x128xf32>
    %61 = arith.minimumf %54, %59 : vector<16x128xf32>
    %c8 = arith.constant 8 : index
    %c0_15 = arith.constant 0 : index
    %62 = vector.load %arg4[%c8, %c0_15] : memref<32x128xf32, #tpu.memory_space<vmem>>, vector<1x128xf32>
    %63 = vector.extract_strided_slice %3 {offsets = [0, 8], sizes = [16, 1], strides = [1, 1]} : vector<16x32xf32> to vector<16x1xf32>
    %64 = vector.broadcast %63 : vector<16x1xf32> to vector<16x128xf32>
    %65 = vector.broadcast %62 : vector<1x128xf32> to vector<16x128xf32>
    %66 = arith.addf %64, %65 : vector<16x128xf32>
    %67 = arith.maximumf %60, %66 : vector<16x128xf32>
    %68 = arith.minimumf %61, %66 : vector<16x128xf32>
    %c9 = arith.constant 9 : index
    %c0_16 = arith.constant 0 : index
    %69 = vector.load %arg4[%c9, %c0_16] : memref<32x128xf32, #tpu.memory_space<vmem>>, vector<1x128xf32>
    %70 = vector.extract_strided_slice %3 {offsets = [0, 9], sizes = [16, 1], strides = [1, 1]} : vector<16x32xf32> to vector<16x1xf32>
    %71 = vector.broadcast %70 : vector<16x1xf32> to vector<16x128xf32>
    %72 = vector.broadcast %69 : vector<1x128xf32> to vector<16x128xf32>
    %73 = arith.addf %71, %72 : vector<16x128xf32>
    %74 = arith.maximumf %67, %73 : vector<16x128xf32>
    %75 = arith.minimumf %68, %73 : vector<16x128xf32>
    %c10 = arith.constant 10 : index
    %c0_17 = arith.constant 0 : index
    %76 = vector.load %arg4[%c10, %c0_17] : memref<32x128xf32, #tpu.memory_space<vmem>>, vector<1x128xf32>
    %77 = vector.extract_strided_slice %3 {offsets = [0, 10], sizes = [16, 1], strides = [1, 1]} : vector<16x32xf32> to vector<16x1xf32>
    %78 = vector.broadcast %77 : vector<16x1xf32> to vector<16x128xf32>
    %79 = vector.broadcast %76 : vector<1x128xf32> to vector<16x128xf32>
    %80 = arith.addf %78, %79 : vector<16x128xf32>
    %81 = arith.maximumf %74, %80 : vector<16x128xf32>
    %82 = arith.minimumf %75, %80 : vector<16x128xf32>
    %c11 = arith.constant 11 : index
    %c0_18 = arith.constant 0 : index
    %83 = vector.load %arg4[%c11, %c0_18] : memref<32x128xf32, #tpu.memory_space<vmem>>, vector<1x128xf32>
    %84 = vector.extract_strided_slice %3 {offsets = [0, 11], sizes = [16, 1], strides = [1, 1]} : vector<16x32xf32> to vector<16x1xf32>
    %85 = vector.broadcast %84 : vector<16x1xf32> to vector<16x128xf32>
    %86 = vector.broadcast %83 : vector<1x128xf32> to vector<16x128xf32>
    %87 = arith.addf %85, %86 : vector<16x128xf32>
    %88 = arith.maximumf %81, %87 : vector<16x128xf32>
    %89 = arith.minimumf %82, %87 : vector<16x128xf32>
    %c12 = arith.constant 12 : index
    %c0_19 = arith.constant 0 : index
    %90 = vector.load %arg4[%c12, %c0_19] : memref<32x128xf32, #tpu.memory_space<vmem>>, vector<1x128xf32>
    %91 = vector.extract_strided_slice %3 {offsets = [0, 12], sizes = [16, 1], strides = [1, 1]} : vector<16x32xf32> to vector<16x1xf32>
    %92 = vector.broadcast %91 : vector<16x1xf32> to vector<16x128xf32>
    %93 = vector.broadcast %90 : vector<1x128xf32> to vector<16x128xf32>
    %94 = arith.addf %92, %93 : vector<16x128xf32>
    %95 = arith.maximumf %88, %94 : vector<16x128xf32>
    %96 = arith.minimumf %89, %94 : vector<16x128xf32>
    %c13 = arith.constant 13 : index
    %c0_20 = arith.constant 0 : index
    %97 = vector.load %arg4[%c13, %c0_20] : memref<32x128xf32, #tpu.memory_space<vmem>>, vector<1x128xf32>
    %98 = vector.extract_strided_slice %3 {offsets = [0, 13], sizes = [16, 1], strides = [1, 1]} : vector<16x32xf32> to vector<16x1xf32>
    %99 = vector.broadcast %98 : vector<16x1xf32> to vector<16x128xf32>
    %100 = vector.broadcast %97 : vector<1x128xf32> to vector<16x128xf32>
    %101 = arith.addf %99, %100 : vector<16x128xf32>
    %102 = arith.maximumf %95, %101 : vector<16x128xf32>
    %103 = arith.minimumf %96, %101 : vector<16x128xf32>
    %c14 = arith.constant 14 : index
    %c0_21 = arith.constant 0 : index
    %104 = vector.load %arg4[%c14, %c0_21] : memref<32x128xf32, #tpu.memory_space<vmem>>, vector<1x128xf32>
    %105 = vector.extract_strided_slice %3 {offsets = [0, 14], sizes = [16, 1], strides = [1, 1]} : vector<16x32xf32> to vector<16x1xf32>
    %106 = vector.broadcast %105 : vector<16x1xf32> to vector<16x128xf32>
    %107 = vector.broadcast %104 : vector<1x128xf32> to vector<16x128xf32>
    %108 = arith.addf %106, %107 : vector<16x128xf32>
    %109 = arith.maximumf %102, %108 : vector<16x128xf32>
    %110 = arith.minimumf %103, %108 : vector<16x128xf32>
    %c15 = arith.constant 15 : index
    %c0_22 = arith.constant 0 : index
    %111 = vector.load %arg4[%c15, %c0_22] : memref<32x128xf32, #tpu.memory_space<vmem>>, vector<1x128xf32>
    %112 = vector.extract_strided_slice %3 {offsets = [0, 15], sizes = [16, 1], strides = [1, 1]} : vector<16x32xf32> to vector<16x1xf32>
    %113 = vector.broadcast %112 : vector<16x1xf32> to vector<16x128xf32>
    %114 = vector.broadcast %111 : vector<1x128xf32> to vector<16x128xf32>
    %115 = arith.addf %113, %114 : vector<16x128xf32>
    %116 = arith.maximumf %109, %115 : vector<16x128xf32>
    %117 = arith.minimumf %110, %115 : vector<16x128xf32>
    %c16 = arith.constant 16 : index
    %c0_23 = arith.constant 0 : index
    %118 = vector.load %arg4[%c16, %c0_23] : memref<32x128xf32, #tpu.memory_space<vmem>>, vector<1x128xf32>
    %119 = vector.extract_strided_slice %3 {offsets = [0, 16], sizes = [16, 1], strides = [1, 1]} : vector<16x32xf32> to vector<16x1xf32>
    %120 = vector.broadcast %119 : vector<16x1xf32> to vector<16x128xf32>
    %121 = vector.broadcast %118 : vector<1x128xf32> to vector<16x128xf32>
    %122 = arith.addf %120, %121 : vector<16x128xf32>
    %123 = arith.maximumf %116, %122 : vector<16x128xf32>
    %124 = arith.minimumf %117, %122 : vector<16x128xf32>
    %c17 = arith.constant 17 : index
    %c0_24 = arith.constant 0 : index
    %125 = vector.load %arg4[%c17, %c0_24] : memref<32x128xf32, #tpu.memory_space<vmem>>, vector<1x128xf32>
    %126 = vector.extract_strided_slice %3 {offsets = [0, 17], sizes = [16, 1], strides = [1, 1]} : vector<16x32xf32> to vector<16x1xf32>
    %127 = vector.broadcast %126 : vector<16x1xf32> to vector<16x128xf32>
    %128 = vector.broadcast %125 : vector<1x128xf32> to vector<16x128xf32>
    %129 = arith.addf %127, %128 : vector<16x128xf32>
    %130 = arith.maximumf %123, %129 : vector<16x128xf32>
    %131 = arith.minimumf %124, %129 : vector<16x128xf32>
    %c18 = arith.constant 18 : index
    %c0_25 = arith.constant 0 : index
    %132 = vector.load %arg4[%c18, %c0_25] : memref<32x128xf32, #tpu.memory_space<vmem>>, vector<1x128xf32>
    %133 = vector.extract_strided_slice %3 {offsets = [0, 18], sizes = [16, 1], strides = [1, 1]} : vector<16x32xf32> to vector<16x1xf32>
    %134 = vector.broadcast %133 : vector<16x1xf32> to vector<16x128xf32>
    %135 = vector.broadcast %132 : vector<1x128xf32> to vector<16x128xf32>
    %136 = arith.addf %134, %135 : vector<16x128xf32>
    %137 = arith.maximumf %130, %136 : vector<16x128xf32>
    %138 = arith.minimumf %131, %136 : vector<16x128xf32>
    %c19 = arith.constant 19 : index
    %c0_26 = arith.constant 0 : index
    %139 = vector.load %arg4[%c19, %c0_26] : memref<32x128xf32, #tpu.memory_space<vmem>>, vector<1x128xf32>
    %140 = vector.extract_strided_slice %3 {offsets = [0, 19], sizes = [16, 1], strides = [1, 1]} : vector<16x32xf32> to vector<16x1xf32>
    %141 = vector.broadcast %140 : vector<16x1xf32> to vector<16x128xf32>
    %142 = vector.broadcast %139 : vector<1x128xf32> to vector<16x128xf32>
    %143 = arith.addf %141, %142 : vector<16x128xf32>
    %144 = arith.maximumf %137, %143 : vector<16x128xf32>
    %145 = arith.minimumf %138, %143 : vector<16x128xf32>
    %c20 = arith.constant 20 : index
    %c0_27 = arith.constant 0 : index
    %146 = vector.load %arg4[%c20, %c0_27] : memref<32x128xf32, #tpu.memory_space<vmem>>, vector<1x128xf32>
    %147 = vector.extract_strided_slice %3 {offsets = [0, 20], sizes = [16, 1], strides = [1, 1]} : vector<16x32xf32> to vector<16x1xf32>
    %148 = vector.broadcast %147 : vector<16x1xf32> to vector<16x128xf32>
    %149 = vector.broadcast %146 : vector<1x128xf32> to vector<16x128xf32>
    %150 = arith.addf %148, %149 : vector<16x128xf32>
    %151 = arith.maximumf %144, %150 : vector<16x128xf32>
    %152 = arith.minimumf %145, %150 : vector<16x128xf32>
    %c21 = arith.constant 21 : index
    %c0_28 = arith.constant 0 : index
    %153 = vector.load %arg4[%c21, %c0_28] : memref<32x128xf32, #tpu.memory_space<vmem>>, vector<1x128xf32>
    %154 = vector.extract_strided_slice %3 {offsets = [0, 21], sizes = [16, 1], strides = [1, 1]} : vector<16x32xf32> to vector<16x1xf32>
    %155 = vector.broadcast %154 : vector<16x1xf32> to vector<16x128xf32>
    %156 = vector.broadcast %153 : vector<1x128xf32> to vector<16x128xf32>
    %157 = arith.addf %155, %156 : vector<16x128xf32>
    %158 = arith.maximumf %151, %157 : vector<16x128xf32>
    %159 = arith.minimumf %152, %157 : vector<16x128xf32>
    %c22 = arith.constant 22 : index
    %c0_29 = arith.constant 0 : index
    %160 = vector.load %arg4[%c22, %c0_29] : memref<32x128xf32, #tpu.memory_space<vmem>>, vector<1x128xf32>
    %161 = vector.extract_strided_slice %3 {offsets = [0, 22], sizes = [16, 1], strides = [1, 1]} : vector<16x32xf32> to vector<16x1xf32>
    %162 = vector.broadcast %161 : vector<16x1xf32> to vector<16x128xf32>
    %163 = vector.broadcast %160 : vector<1x128xf32> to vector<16x128xf32>
    %164 = arith.addf %162, %163 : vector<16x128xf32>
    %165 = arith.maximumf %158, %164 : vector<16x128xf32>
    %166 = arith.minimumf %159, %164 : vector<16x128xf32>
    %c23 = arith.constant 23 : index
    %c0_30 = arith.constant 0 : index
    %167 = vector.load %arg4[%c23, %c0_30] : memref<32x128xf32, #tpu.memory_space<vmem>>, vector<1x128xf32>
    %168 = vector.extract_strided_slice %3 {offsets = [0, 23], sizes = [16, 1], strides = [1, 1]} : vector<16x32xf32> to vector<16x1xf32>
    %169 = vector.broadcast %168 : vector<16x1xf32> to vector<16x128xf32>
    %170 = vector.broadcast %167 : vector<1x128xf32> to vector<16x128xf32>
    %171 = arith.addf %169, %170 : vector<16x128xf32>
    %172 = arith.maximumf %165, %171 : vector<16x128xf32>
    %173 = arith.minimumf %166, %171 : vector<16x128xf32>
    %c24 = arith.constant 24 : index
    %c0_31 = arith.constant 0 : index
    %174 = vector.load %arg4[%c24, %c0_31] : memref<32x128xf32, #tpu.memory_space<vmem>>, vector<1x128xf32>
    %175 = vector.extract_strided_slice %3 {offsets = [0, 24], sizes = [16, 1], strides = [1, 1]} : vector<16x32xf32> to vector<16x1xf32>
    %176 = vector.broadcast %175 : vector<16x1xf32> to vector<16x128xf32>
    %177 = vector.broadcast %174 : vector<1x128xf32> to vector<16x128xf32>
    %178 = arith.addf %176, %177 : vector<16x128xf32>
    %179 = arith.maximumf %172, %178 : vector<16x128xf32>
    %180 = arith.minimumf %173, %178 : vector<16x128xf32>
    %c25 = arith.constant 25 : index
    %c0_32 = arith.constant 0 : index
    %181 = vector.load %arg4[%c25, %c0_32] : memref<32x128xf32, #tpu.memory_space<vmem>>, vector<1x128xf32>
    %182 = vector.extract_strided_slice %3 {offsets = [0, 25], sizes = [16, 1], strides = [1, 1]} : vector<16x32xf32> to vector<16x1xf32>
    %183 = vector.broadcast %182 : vector<16x1xf32> to vector<16x128xf32>
    %184 = vector.broadcast %181 : vector<1x128xf32> to vector<16x128xf32>
    %185 = arith.addf %183, %184 : vector<16x128xf32>
    %186 = arith.maximumf %179, %185 : vector<16x128xf32>
    %187 = arith.minimumf %180, %185 : vector<16x128xf32>
    %c26 = arith.constant 26 : index
    %c0_33 = arith.constant 0 : index
    %188 = vector.load %arg4[%c26, %c0_33] : memref<32x128xf32, #tpu.memory_space<vmem>>, vector<1x128xf32>
    %189 = vector.extract_strided_slice %3 {offsets = [0, 26], sizes = [16, 1], strides = [1, 1]} : vector<16x32xf32> to vector<16x1xf32>
    %190 = vector.broadcast %189 : vector<16x1xf32> to vector<16x128xf32>
    %191 = vector.broadcast %188 : vector<1x128xf32> to vector<16x128xf32>
    %192 = arith.addf %190, %191 : vector<16x128xf32>
    %193 = arith.maximumf %186, %192 : vector<16x128xf32>
    %194 = arith.minimumf %187, %192 : vector<16x128xf32>
    %c27 = arith.constant 27 : index
    %c0_34 = arith.constant 0 : index
    %195 = vector.load %arg4[%c27, %c0_34] : memref<32x128xf32, #tpu.memory_space<vmem>>, vector<1x128xf32>
    %196 = vector.extract_strided_slice %3 {offsets = [0, 27], sizes = [16, 1], strides = [1, 1]} : vector<16x32xf32> to vector<16x1xf32>
    %197 = vector.broadcast %196 : vector<16x1xf32> to vector<16x128xf32>
    %198 = vector.broadcast %195 : vector<1x128xf32> to vector<16x128xf32>
    %199 = arith.addf %197, %198 : vector<16x128xf32>
    %200 = arith.maximumf %193, %199 : vector<16x128xf32>
    %201 = arith.minimumf %194, %199 : vector<16x128xf32>
    %c28 = arith.constant 28 : index
    %c0_35 = arith.constant 0 : index
    %202 = vector.load %arg4[%c28, %c0_35] : memref<32x128xf32, #tpu.memory_space<vmem>>, vector<1x128xf32>
    %203 = vector.extract_strided_slice %3 {offsets = [0, 28], sizes = [16, 1], strides = [1, 1]} : vector<16x32xf32> to vector<16x1xf32>
    %204 = vector.broadcast %203 : vector<16x1xf32> to vector<16x128xf32>
    %205 = vector.broadcast %202 : vector<1x128xf32> to vector<16x128xf32>
    %206 = arith.addf %204, %205 : vector<16x128xf32>
    %207 = arith.maximumf %200, %206 : vector<16x128xf32>
    %208 = arith.minimumf %201, %206 : vector<16x128xf32>
    %c29 = arith.constant 29 : index
    %c0_36 = arith.constant 0 : index
    %209 = vector.load %arg4[%c29, %c0_36] : memref<32x128xf32, #tpu.memory_space<vmem>>, vector<1x128xf32>
    %210 = vector.extract_strided_slice %3 {offsets = [0, 29], sizes = [16, 1], strides = [1, 1]} : vector<16x32xf32> to vector<16x1xf32>
    %211 = vector.broadcast %210 : vector<16x1xf32> to vector<16x128xf32>
    %212 = vector.broadcast %209 : vector<1x128xf32> to vector<16x128xf32>
    %213 = arith.addf %211, %212 : vector<16x128xf32>
    %214 = arith.maximumf %207, %213 : vector<16x128xf32>
    %215 = arith.minimumf %208, %213 : vector<16x128xf32>
    %c30 = arith.constant 30 : index
    %c0_37 = arith.constant 0 : index
    %216 = vector.load %arg4[%c30, %c0_37] : memref<32x128xf32, #tpu.memory_space<vmem>>, vector<1x128xf32>
    %217 = vector.extract_strided_slice %3 {offsets = [0, 30], sizes = [16, 1], strides = [1, 1]} : vector<16x32xf32> to vector<16x1xf32>
    %218 = vector.broadcast %217 : vector<16x1xf32> to vector<16x128xf32>
    %219 = vector.broadcast %216 : vector<1x128xf32> to vector<16x128xf32>
    %220 = arith.addf %218, %219 : vector<16x128xf32>
    %221 = arith.maximumf %214, %220 : vector<16x128xf32>
    %222 = arith.minimumf %215, %220 : vector<16x128xf32>
    %c31 = arith.constant 31 : index
    %c0_38 = arith.constant 0 : index
    %223 = vector.load %arg4[%c31, %c0_38] : memref<32x128xf32, #tpu.memory_space<vmem>>, vector<1x128xf32>
    %224 = vector.extract_strided_slice %3 {offsets = [0, 31], sizes = [16, 1], strides = [1, 1]} : vector<16x32xf32> to vector<16x1xf32>
    %225 = vector.broadcast %224 : vector<16x1xf32> to vector<16x128xf32>
    %226 = vector.broadcast %223 : vector<1x128xf32> to vector<16x128xf32>
    %227 = arith.addf %225, %226 : vector<16x128xf32>
    %228 = arith.maximumf %221, %227 : vector<16x128xf32>
    %229 = arith.minimumf %222, %227 : vector<16x128xf32>
    %c0_39 = arith.constant 0 : index
    %c0_40 = arith.constant 0 : index
    %230 = vector.load %arg6[%c0_39, %c0_40] : memref<16x128xf32, #tpu.memory_space<vmem>>, vector<16x128xf32>
    tpu.vector_store %arg6[%c0_39, %c0_40], %228 {strides = array<i32>} : memref<16x128xf32, #tpu.memory_space<vmem>>, vector<16x128xf32>,
    %c0_41 = arith.constant 0 : index
    %c0_42 = arith.constant 0 : index
    %231 = vector.load %arg7[%c0_41, %c0_42] : memref<16x128xf32, #tpu.memory_space<vmem>>, vector<16x128xf32>
    tpu.vector_store %arg7[%c0_41, %c0_42], %229 {strides = array<i32>} : memref<16x128xf32, #tpu.memory_space<vmem>>, vector<16x128xf32>,
    %c0_i32_43 = arith.constant 0 : i32
    %232 = arith.cmpi eq, %arg2, %c0_i32_43 : i32
    %233 = arith.extui %232 : i1 to i32
    %c0_i32_44 = arith.constant 0 : i32
    %234 = arith.cmpi ne, %233, %c0_i32_44 : i32
    scf.if %234 {
      %c0_45 = arith.constant 0 : index
      %c0_46 = arith.constant 0 : index
      %235 = vector.load %arg6[%c0_45, %c0_46] : memref<16x128xf32, #tpu.memory_space<vmem>>, vector<16x128xf32>
      %c0_47 = arith.constant 0 : index
      %c0_48 = arith.constant 0 : index
      %236 = vector.load %arg7[%c0_47, %c0_48] : memref<16x128xf32, #tpu.memory_space<vmem>>, vector<16x128xf32>
      %237 = arith.addf %235, %236 : vector<16x128xf32>
      %c0_49 = arith.constant 0 : index
      %c0_50 = arith.constant 0 : index
      %238 = vector.load %arg5[%c0_49, %c0_50] : memref<16x128xf32, #tpu.memory_space<vmem>>, vector<16x128xf32>
      tpu.vector_store %arg5[%c0_49, %c0_50], %237 {strides = array<i32>} : memref<16x128xf32, #tpu.memory_space<vmem>>, vector<16x128xf32>,
    } else {
    }
    return
  }
  func.func @transform_0(%arg0: i32, %arg1: i32, %arg2: i32) -> (i32, i32) {
    %c0_i32 = arith.constant 0 : i32
    return %arg0, %arg2 : i32, i32
  }
  func.func @transform_1(%arg0: i32, %arg1: i32, %arg2: i32) -> (i32, i32) {
    %c0_i32 = arith.constant 0 : i32
    return %arg2, %arg1 : i32, i32
  }
  func.func @transform_2(%arg0: i32, %arg1: i32, %arg2: i32) -> (i32, i32) {
    %c0_i32 = arith.constant 0 : i32
    return %arg0, %arg1 : i32, i32
  }
}

</mosaic_0001>

<llo_original>
// kernel: tpu_custom_call.1
$region0: #{tpu_custom_call.1}
  #allocation0 [shape = 'u32[]', space=smem, size = 0x4, offset = 0x4, fixed_abs, tag = 'smem constant byte address 0x4 - core index']
  #allocation1 [shape = 'u32[72,128]{1,0:T(1,128)}', space=vmem, size = 0x9000, scoped, tag = 'internal scratch']
  #allocation2 [shape = 'f32[16,128]{1,0:T(8,128)}', space=vmem, size = 0x2000, scoped, tag = 'scratch operand']
  #allocation3 [shape = 'f32[16,128]{1,0:T(8,128)}', space=vmem, size = 0x2000, scoped, tag = 'scratch operand']
  %s0 = inlined_call_operand.hbm [shape: f32[16,32], index: 0, kind: input, shape index: {}]
  %s1 = inlined_call_operand.hbm [shape: f32[32,128], index: 1, kind: input, shape index: {}]
  %s2 = inlined_call_operand.hbm [shape: f32[16,128], index: 2, kind: output, shape index: {}]
  %s3 = sld [smem:[#allocation0]]
  $region34: #{tpu_custom_call.1} parent=0
    _
  %s5 = ssub.s32 1, %s3
  %s6 = scalar_select 0, %s5, %s3
  $region1: #{tpu_custom_call.1} parent=0
    #allocation4 [shape = 'u8[8192]{0}', space=vmem, size = 0x2000, scoped, tag = 'input window, operand 0, single buffered']
    #allocation5 [shape = 's32[1]{0}', space=sflag, size = 0x4, scoped, tag = 'scoped memory for tpu_custom_call.1']
    #allocation6 [shape = 's32[1]{0}', space=sflag, size = 0x4, scoped, tag = 'scoped memory for tpu_custom_call.1']
    #allocation7 [shape = 'u8[16384]{0}', space=vmem, size = 0x4000, scoped, tag = 'input window, operand 1, single buffered']
    #allocation8 [shape = 's32[1]{0}', space=sflag, size = 0x4, scoped, tag = 'scoped memory for tpu_custom_call.1']
    #allocation9 [shape = 'u8[8192]{0}', space=vmem, size = 0x2000, scoped, tag = 'output window, operand 0, single buffered']
    %7 = vsyncpa [#allocation5], 0
    %8 = vsyncpa [#allocation8], 0
    %9 = vsyncpa [#allocation6], 0
    // Predicated region
    $region2: #{tpu_custom_call.1} parent=1 // pred_check
      _
    $region3: #{tpu_custom_call.1} parent=1 // pred_check_branch
      %11 = sbr.rel (0) target = $region5
    $region4: #{tpu_custom_call.1} parent=1 // pred_region
      %13 = vsyncadd [#allocation5], 0
      %s14 = sshll.u32 %s0, 4
      %s15 = int_to_ptr.hbm [resolvable:$true] %s14
      %s16 = sshll.u32 [#allocation4], 4
      %s17 = int_to_ptr.vmem [resolvable:$true] %s16
      %22 = dma.hbm_to_vmem [thread:$0]  %s15, 256, %s17, [#allocation5], 128, 128, 8
    $region5: #{tpu_custom_call.1} parent=1 // pred_fallthru
      _
    // Predicated region
    $region6: #{tpu_custom_call.1} parent=1 // pred_check
      _
    $region7: #{tpu_custom_call.1} parent=1 // pred_check_branch
      %24 = sbr.rel (0) target = $region9
    $region8: #{tpu_custom_call.1} parent=1 // pred_region
      %26 = vsyncadd [#allocation8], 0
      %s27 = sshll.u32 %s1, 4
      %s28 = int_to_ptr.hbm [resolvable:$true] %s27
      %s29 = sshll.u32 [#allocation7], 4
      %s30 = int_to_ptr.vmem [resolvable:$true] %s29
      %35 = dma.hbm_to_vmem [thread:$0]  %s28, 512, %s30, [#allocation8], 128, 128, 8
    $region9: #{tpu_custom_call.1} parent=1 // pred_fallthru
      _
    // Predicated region
    $region10: #{tpu_custom_call.1} parent=1 // pred_check
      _
    $region11: #{tpu_custom_call.1} parent=1 // pred_check_branch
      %37 = sbr.rel (0) target = $region13
    $region12: #{tpu_custom_call.1} parent=1 // pred_region
      %39 = dma.done [#allocation5], 256
    $region13: #{tpu_custom_call.1} parent=1 // pred_fallthru
      _
    // Predicated region
    $region14: #{tpu_custom_call.1} parent=1 // pred_check
      _
    $region15: #{tpu_custom_call.1} parent=1 // pred_check_branch
      %41 = sbr.rel (0) target = $region17
    $region16: #{tpu_custom_call.1} parent=1 // pred_region
      %43 = dma.done [#allocation8], 512
    $region17: #{tpu_custom_call.1} parent=1 // pred_fallthru
      _
    %p44 = scmp.eq.s32.totalorder 0, 0
    // Predicated region
    $region18: #{tpu_custom_call.1} parent=1 // pred_check
      %p45 = pneg %p44
    $region19: #{tpu_custom_call.1} parent=1 // pred_check_branch
      %47 = sbr.rel (%p45) target = $region21
    $region20: #{tpu_custom_call.1} parent=1 // pred_region
      %48 = vst [vmem:[#allocation2] sm:$0xff] -inf
      %49 = vst [vmem:[#allocation2 + $0x8] sm:$0xff] -inf
      %50 = vst [vmem:[#allocation3] sm:$0xff] inf
      %51 = vst [vmem:[#allocation3 + $0x8] sm:$0xff] inf
    $region21: #{tpu_custom_call.1} parent=1 // pred_fallthru
      _
    %v52 = vld [vmem:[#allocation4] sm:$0xff]
    %v53 = vld [vmem:[#allocation4 + $0x8] sm:$0xff]
    %v54 = vld [vmem:[#allocation2] sm:$0xff]
    %v55 = vld [vmem:[#allocation2 + $0x8] sm:$0xff]
    %v56 = vld [vmem:[#allocation3] sm:$0xff]
    %v57 = vld [vmem:[#allocation3 + $0x8] sm:$0xff]
    %v58 = vld [vmem:[#allocation7] sm:$0x1]
    %60 = vset.pattern.permute.xlu0 0
    %61 = vperm.xlu0 %60, %v52
    %v62 = vpop.permute.xlu0 %61
    %65 = vset.pattern.permute.xlu0 0
    %66 = vperm.xlu0 %65, %v53
    %v67 = vpop.permute.xlu0 %66
    %v69 = vperm.slane %v58, 0
    %v70 = vadd.f32 %v62, %v69
    %v71 = vadd.f32 %v67, %v69
    %v72 = vmax.f32 %v54, %v70
    %v73 = vmax.f32 %v55, %v71
    %v74 = vmin.f32 %v56, %v70
    %v75 = vmin.f32 %v57, %v71
    %v76 = vld [vmem:[#allocation7 + $0x1] sm:$0x1]
    %77 = vset.pattern.permute.xlu0 1
    %78 = vperm.xlu0 %77, %v52
    %v79 = vpop.permute.xlu0 %78
    %81 = vset.pattern.permute.xlu0 1
    %82 = vperm.xlu0 %81, %v53
    %v83 = vpop.permute.xlu0 %82
    %v85 = vperm.slane %v76, 0
    %v86 = vadd.f32 %v79, %v85
    %v87 = vadd.f32 %v83, %v85
    %v88 = vmax.f32 %v72, %v86
    %v89 = vmax.f32 %v73, %v87
    %v90 = vmin.f32 %v74, %v86
    %v91 = vmin.f32 %v75, %v87
    %v92 = vld [vmem:[#allocation7 + $0x2] sm:$0x1]
    %93 = vset.pattern.permute.xlu0 2
    %94 = vperm.xlu0 %93, %v52
    %v95 = vpop.permute.xlu0 %94
    %97 = vset.pattern.permute.xlu0 2
    %98 = vperm.xlu0 %97, %v53
    %v99 = vpop.permute.xlu0 %98
    %v101 = vperm.slane %v92, 0
    %v102 = vadd.f32 %v95, %v101
    %v103 = vadd.f32 %v99, %v101
    %v104 = vmax.f32 %v88, %v102
    %v105 = vmax.f32 %v89, %v103
    %v106 = vmin.f32 %v90, %v102
    %v107 = vmin.f32 %v91, %v103
    %v108 = vld [vmem:[#allocation7 + $0x3] sm:$0x1]
    %109 = vset.pattern.permute.xlu0 3
    %110 = vperm.xlu0 %109, %v52
    %v111 = vpop.permute.xlu0 %110
    %113 = vset.pattern.permute.xlu0 3
    %114 = vperm.xlu0 %113, %v53
    %v115 = vpop.permute.xlu0 %114
    %v117 = vperm.slane %v108, 0
    %v118 = vadd.f32 %v111, %v117
    %v119 = vadd.f32 %v115, %v117
    %v120 = vmax.f32 %v104, %v118
    %v121 = vmax.f32 %v105, %v119
    %v122 = vmin.f32 %v106, %v118
    %v123 = vmin.f32 %v107, %v119
    %v124 = vld [vmem:[#allocation7 + $0x4] sm:$0x1]
    %125 = vset.pattern.permute.xlu0 4
    %126 = vperm.xlu0 %125, %v52
    %v127 = vpop.permute.xlu0 %126
    %129 = vset.pattern.permute.xlu0 4
    %130 = vperm.xlu0 %129, %v53
    %v131 = vpop.permute.xlu0 %130
    %v133 = vperm.slane %v124, 0
    %v134 = vadd.f32 %v127, %v133
    %v135 = vadd.f32 %v131, %v133
    %v136 = vmax.f32 %v120, %v134
    %v137 = vmax.f32 %v121, %v135
    %v138 = vmin.f32 %v122, %v134
    %v139 = vmin.f32 %v123, %v135
    %v140 = vld [vmem:[#allocation7 + $0x5] sm:$0x1]
    %141 = vset.pattern.permute.xlu0 5
    %142 = vperm.xlu0 %141, %v52
    %v143 = vpop.permute.xlu0 %142
    %145 = vset.pattern.permute.xlu0 5
    %146 = vperm.xlu0 %145, %v53
    %v147 = vpop.permute.xlu0 %146
    %v149 = vperm.slane %v140, 0
    %v150 = vadd.f32 %v143, %v149
    %v151 = vadd.f32 %v147, %v149
    %v152 = vmax.f32 %v136, %v150
    %v153 = vmax.f32 %v137, %v151
    %v154 = vmin.f32 %v138, %v150
    %v155 = vmin.f32 %v139, %v151
    %v156 = vld [vmem:[#allocation7 + $0x6] sm:$0x1]
    %157 = vset.pattern.permute.xlu0 6
    %158 = vperm.xlu0 %157, %v52
    %v159 = vpop.permute.xlu0 %158
    %161 = vset.pattern.permute.xlu0 6
    %162 = vperm.xlu0 %161, %v53
    %v163 = vpop.permute.xlu0 %162
    %v165 = vperm.slane %v156, 0
    %v166 = vadd.f32 %v159, %v165
    %v167 = vadd.f32 %v163, %v165
    %v168 = vmax.f32 %v152, %v166
    %v169 = vmax.f32 %v153, %v167
    %v170 = vmin.f32 %v154, %v166
    %v171 = vmin.f32 %v155, %v167
    %v172 = vld [vmem:[#allocation7 + $0x7] sm:$0x1]
    %173 = vset.pattern.permute.xlu0 7
    %174 = vperm.xlu0 %173, %v52
    %v175 = vpop.permute.xlu0 %174
    %177 = vset.pattern.permute.xlu0 7
    %178 = vperm.xlu0 %177, %v53
    %v179 = vpop.permute.xlu0 %178
    %v181 = vperm.slane %v172, 0
    %v182 = vadd.f32 %v175, %v181
    %v183 = vadd.f32 %v179, %v181
    %v184 = vmax.f32 %v168, %v182
    %v185 = vmax.f32 %v169, %v183
    %v186 = vmin.f32 %v170, %v182
    %v187 = vmin.f32 %v171, %v183
    %v188 = vld [vmem:[#allocation7 + $0x8] sm:$0x1]
    %189 = vset.pattern.permute.xlu0 8
    %190 = vperm.xlu0 %189, %v52
    %v191 = vpop.permute.xlu0 %190
    %193 = vset.pattern.permute.xlu0 8
    %194 = vperm.xlu0 %193, %v53
    %v195 = vpop.permute.xlu0 %194
    %v197 = vperm.slane %v188, 0
    %v198 = vadd.f32 %v191, %v197
    %v199 = vadd.f32 %v195, %v197
    %v200 = vmax.f32 %v184, %v198
    %v201 = vmax.f32 %v185, %v199
    %v202 = vmin.f32 %v186, %v198
    %v203 = vmin.f32 %v187, %v199
    %v204 = vld [vmem:[#allocation7 + $0x9] sm:$0x1]
    %205 = vset.pattern.permute.xlu0 9
    %206 = vperm.xlu0 %205, %v52
    %v207 = vpop.permute.xlu0 %206
    %209 = vset.pattern.permute.xlu0 9
    %210 = vperm.xlu0 %209, %v53
    %v211 = vpop.permute.xlu0 %210
    %v213 = vperm.slane %v204, 0
    %v214 = vadd.f32 %v207, %v213
    %v215 = vadd.f32 %v211, %v213
    %v216 = vmax.f32 %v200, %v214
    %v217 = vmax.f32 %v201, %v215
    %v218 = vmin.f32 %v202, %v214
    %v219 = vmin.f32 %v203, %v215
    %v220 = vld [vmem:[#allocation7 + $0xa] sm:$0x1]
    %221 = vset.pattern.permute.xlu0 10
    %222 = vperm.xlu0 %221, %v52
    %v223 = vpop.permute.xlu0 %222
    %225 = vset.pattern.permute.xlu0 10
    %226 = vperm.xlu0 %225, %v53
    %v227 = vpop.permute.xlu0 %226
    %v229 = vperm.slane %v220, 0
    %v230 = vadd.f32 %v223, %v229
    %v231 = vadd.f32 %v227, %v229
    %v232 = vmax.f32 %v216, %v230
    %v233 = vmax.f32 %v217, %v231
    %v234 = vmin.f32 %v218, %v230
    %v235 = vmin.f32 %v219, %v231
    %v236 = vld [vmem:[#allocation7 + $0xb] sm:$0x1]
    %237 = vset.pattern.permute.xlu0 11
    %238 = vperm.xlu0 %237, %v52
    %v239 = vpop.permute.xlu0 %238
    %241 = vset.pattern.permute.xlu0 11
    %242 = vperm.xlu0 %241, %v53
    %v243 = vpop.permute.xlu0 %242
    %v245 = vperm.slane %v236, 0
    %v246 = vadd.f32 %v239, %v245
    %v247 = vadd.f32 %v243, %v245
    %v248 = vmax.f32 %v232, %v246
    %v249 = vmax.f32 %v233, %v247
    %v250 = vmin.f32 %v234, %v246
    %v251 = vmin.f32 %v235, %v247
    %v252 = vld [vmem:[#allocation7 + $0xc] sm:$0x1]
    %253 = vset.pattern.permute.xlu0 12
    %254 = vperm.xlu0 %253, %v52
    %v255 = vpop.permute.xlu0 %254
    %257 = vset.pattern.permute.xlu0 12
    %258 = vperm.xlu0 %257, %v53
    %v259 = vpop.permute.xlu0 %258
    %v261 = vperm.slane %v252, 0
    %v262 = vadd.f32 %v255, %v261
    %v263 = vadd.f32 %v259, %v261
    %v264 = vmax.f32 %v248, %v262
    %v265 = vmax.f32 %v249, %v263
    %v266 = vmin.f32 %v250, %v262
    %v267 = vmin.f32 %v251, %v263
    %v268 = vld [vmem:[#allocation7 + $0xd] sm:$0x1]
    %269 = vset.pattern.permute.xlu0 13
    %270 = vperm.xlu0 %269, %v52
    %v271 = vpop.permute.xlu0 %270
    %273 = vset.pattern.permute.xlu0 13
    %274 = vperm.xlu0 %273, %v53
    %v275 = vpop.permute.xlu0 %274
    %v277 = vperm.slane %v268, 0
    %v278 = vadd.f32 %v271, %v277
    %v279 = vadd.f32 %v275, %v277
    %v280 = vmax.f32 %v264, %v278
    %v281 = vmax.f32 %v265, %v279
    %v282 = vmin.f32 %v266, %v278
    %v283 = vmin.f32 %v267, %v279
    %v284 = vld [vmem:[#allocation7 + $0xe] sm:$0x1]
    %285 = vset.pattern.permute.xlu0 14
    %286 = vperm.xlu0 %285, %v52
    %v287 = vpop.permute.xlu0 %286
    %289 = vset.pattern.permute.xlu0 14
    %290 = vperm.xlu0 %289, %v53
    %v291 = vpop.permute.xlu0 %290
    %v293 = vperm.slane %v284, 0
    %v294 = vadd.f32 %v287, %v293
    %v295 = vadd.f32 %v291, %v293
    %v296 = vmax.f32 %v280, %v294
    %v297 = vmax.f32 %v281, %v295
    %v298 = vmin.f32 %v282, %v294
    %v299 = vmin.f32 %v283, %v295
    %v300 = vld [vmem:[#allocation7 + $0xf] sm:$0x1]
    %301 = vset.pattern.permute.xlu0 15
    %302 = vperm.xlu0 %301, %v52
    %v303 = vpop.permute.xlu0 %302
    %305 = vset.pattern.permute.xlu0 15
    %306 = vperm.xlu0 %305, %v53
    %v307 = vpop.permute.xlu0 %306
    %v309 = vperm.slane %v300, 0
    %v310 = vadd.f32 %v303, %v309
    %v311 = vadd.f32 %v307, %v309
    %v312 = vmax.f32 %v296, %v310
    %v313 = vmax.f32 %v297, %v311
    %v314 = vmin.f32 %v298, %v310
    %v315 = vmin.f32 %v299, %v311
    %v316 = vld [vmem:[#allocation7 + $0x10] sm:$0x1]
    %317 = vset.pattern.permute.xlu0 16
    %318 = vperm.xlu0 %317, %v52
    %v319 = vpop.permute.xlu0 %318
    %321 = vset.pattern.permute.xlu0 16
    %322 = vperm.xlu0 %321, %v53
    %v323 = vpop.permute.xlu0 %322
    %v325 = vperm.slane %v316, 0
    %v326 = vadd.f32 %v319, %v325
    %v327 = vadd.f32 %v323, %v325
    %v328 = vmax.f32 %v312, %v326
    %v329 = vmax.f32 %v313, %v327
    %v330 = vmin.f32 %v314, %v326
    %v331 = vmin.f32 %v315, %v327
    %v332 = vld [vmem:[#allocation7 + $0x11] sm:$0x1]
    %333 = vset.pattern.permute.xlu0 17
    %334 = vperm.xlu0 %333, %v52
    %v335 = vpop.permute.xlu0 %334
    %337 = vset.pattern.permute.xlu0 17
    %338 = vperm.xlu0 %337, %v53
    %v339 = vpop.permute.xlu0 %338
    %v341 = vperm.slane %v332, 0
    %v342 = vadd.f32 %v335, %v341
    %v343 = vadd.f32 %v339, %v341
    %v344 = vmax.f32 %v328, %v342
    %v345 = vmax.f32 %v329, %v343
    %v346 = vmin.f32 %v330, %v342
    %v347 = vmin.f32 %v331, %v343
    %v348 = vld [vmem:[#allocation7 + $0x12] sm:$0x1]
    %349 = vset.pattern.permute.xlu0 18
    %350 = vperm.xlu0 %349, %v52
    %v351 = vpop.permute.xlu0 %350
    %353 = vset.pattern.permute.xlu0 18
    %354 = vperm.xlu0 %353, %v53
    %v355 = vpop.permute.xlu0 %354
    %v357 = vperm.slane %v348, 0
    %v358 = vadd.f32 %v351, %v357
    %v359 = vadd.f32 %v355, %v357
    %v360 = vmax.f32 %v344, %v358
    %v361 = vmax.f32 %v345, %v359
    %v362 = vmin.f32 %v346, %v358
    %v363 = vmin.f32 %v347, %v359
    %v364 = vld [vmem:[#allocation7 + $0x13] sm:$0x1]
    %365 = vset.pattern.permute.xlu0 19
    %366 = vperm.xlu0 %365, %v52
    %v367 = vpop.permute.xlu0 %366
    %369 = vset.pattern.permute.xlu0 19
    %370 = vperm.xlu0 %369, %v53
    %v371 = vpop.permute.xlu0 %370
    %v373 = vperm.slane %v364, 0
    %v374 = vadd.f32 %v367, %v373
    %v375 = vadd.f32 %v371, %v373
    %v376 = vmax.f32 %v360, %v374
    %v377 = vmax.f32 %v361, %v375
    %v378 = vmin.f32 %v362, %v374
    %v379 = vmin.f32 %v363, %v375
    %v380 = vld [vmem:[#allocation7 + $0x14] sm:$0x1]
    %381 = vset.pattern.permute.xlu0 20
    %382 = vperm.xlu0 %381, %v52
    %v383 = vpop.permute.xlu0 %382
    %385 = vset.pattern.permute.xlu0 20
    %386 = vperm.xlu0 %385, %v53
    %v387 = vpop.permute.xlu0 %386
    %v389 = vperm.slane %v380, 0
    %v390 = vadd.f32 %v383, %v389
    %v391 = vadd.f32 %v387, %v389
    %v392 = vmax.f32 %v376, %v390
    %v393 = vmax.f32 %v377, %v391
    %v394 = vmin.f32 %v378, %v390
    %v395 = vmin.f32 %v379, %v391
    %v396 = vld [vmem:[#allocation7 + $0x15] sm:$0x1]
    %397 = vset.pattern.permute.xlu0 21
    %398 = vperm.xlu0 %397, %v52
    %v399 = vpop.permute.xlu0 %398
    %401 = vset.pattern.permute.xlu0 21
    %402 = vperm.xlu0 %401, %v53
    %v403 = vpop.permute.xlu0 %402
    %v405 = vperm.slane %v396, 0
    %v406 = vadd.f32 %v399, %v405
    %v407 = vadd.f32 %v403, %v405
    %v408 = vmax.f32 %v392, %v406
    %v409 = vmax.f32 %v393, %v407
    %v410 = vmin.f32 %v394, %v406
    %v411 = vmin.f32 %v395, %v407
    %v412 = vld [vmem:[#allocation7 + $0x16] sm:$0x1]
    %413 = vset.pattern.permute.xlu0 22
    %414 = vperm.xlu0 %413, %v52
    %v415 = vpop.permute.xlu0 %414
    %417 = vset.pattern.permute.xlu0 22
    %418 = vperm.xlu0 %417, %v53
    %v419 = vpop.permute.xlu0 %418
    %v421 = vperm.slane %v412, 0
    %v422 = vadd.f32 %v415, %v421
    %v423 = vadd.f32 %v419, %v421
    %v424 = vmax.f32 %v408, %v422
    %v425 = vmax.f32 %v409, %v423
    %v426 = vmin.f32 %v410, %v422
    %v427 = vmin.f32 %v411, %v423
    %v428 = vld [vmem:[#allocation7 + $0x17] sm:$0x1]
    %429 = vset.pattern.permute.xlu0 23
    %430 = vperm.xlu0 %429, %v52
    %v431 = vpop.permute.xlu0 %430
    %433 = vset.pattern.permute.xlu0 23
    %434 = vperm.xlu0 %433, %v53
    %v435 = vpop.permute.xlu0 %434
    %v437 = vperm.slane %v428, 0
    %v438 = vadd.f32 %v431, %v437
    %v439 = vadd.f32 %v435, %v437
    %v440 = vmax.f32 %v424, %v438
    %v441 = vmax.f32 %v425, %v439
    %v442 = vmin.f32 %v426, %v438
    %v443 = vmin.f32 %v427, %v439
    %v444 = vld [vmem:[#allocation7 + $0x18] sm:$0x1]
    %445 = vset.pattern.permute.xlu0 24
    %446 = vperm.xlu0 %445, %v52
    %v447 = vpop.permute.xlu0 %446
    %449 = vset.pattern.permute.xlu0 24
    %450 = vperm.xlu0 %449, %v53
    %v451 = vpop.permute.xlu0 %450
    %v453 = vperm.slane %v444, 0
    %v454 = vadd.f32 %v447, %v453
    %v455 = vadd.f32 %v451, %v453
    %v456 = vmax.f32 %v440, %v454
    %v457 = vmax.f32 %v441, %v455
    %v458 = vmin.f32 %v442, %v454
    %v459 = vmin.f32 %v443, %v455
    %v460 = vld [vmem:[#allocation7 + $0x19] sm:$0x1]
    %461 = vset.pattern.permute.xlu0 25
    %462 = vperm.xlu0 %461, %v52
    %v463 = vpop.permute.xlu0 %462
    %465 = vset.pattern.permute.xlu0 25
    %466 = vperm.xlu0 %465, %v53
    %v467 = vpop.permute.xlu0 %466
    %v469 = vperm.slane %v460, 0
    %v470 = vadd.f32 %v463, %v469
    %v471 = vadd.f32 %v467, %v469
    %v472 = vmax.f32 %v456, %v470
    %v473 = vmax.f32 %v457, %v471
    %v474 = vmin.f32 %v458, %v470
    %v475 = vmin.f32 %v459, %v471
    %v476 = vld [vmem:[#allocation7 + $0x1a] sm:$0x1]
    %477 = vset.pattern.permute.xlu0 26
    %478 = vperm.xlu0 %477, %v52
    %v479 = vpop.permute.xlu0 %478
    %481 = vset.pattern.permute.xlu0 26
    %482 = vperm.xlu0 %481, %v53
    %v483 = vpop.permute.xlu0 %482
    %v485 = vperm.slane %v476, 0
    %v486 = vadd.f32 %v479, %v485
    %v487 = vadd.f32 %v483, %v485
    %v488 = vmax.f32 %v472, %v486
    %v489 = vmax.f32 %v473, %v487
    %v490 = vmin.f32 %v474, %v486
    %v491 = vmin.f32 %v475, %v487
    %v492 = vld [vmem:[#allocation7 + $0x1b] sm:$0x1]
    %493 = vset.pattern.permute.xlu0 27
    %494 = vperm.xlu0 %493, %v52
    %v495 = vpop.permute.xlu0 %494
    %497 = vset.pattern.permute.xlu0 27
    %498 = vperm.xlu0 %497, %v53
    %v499 = vpop.permute.xlu0 %498
    %v501 = vperm.slane %v492, 0
    %v502 = vadd.f32 %v495, %v501
    %v503 = vadd.f32 %v499, %v501
    %v504 = vmax.f32 %v488, %v502
    %v505 = vmax.f32 %v489, %v503
    %v506 = vmin.f32 %v490, %v502
    %v507 = vmin.f32 %v491, %v503
    %v508 = vld [vmem:[#allocation7 + $0x1c] sm:$0x1]
    %509 = vset.pattern.permute.xlu0 28
    %510 = vperm.xlu0 %509, %v52
    %v511 = vpop.permute.xlu0 %510
    %513 = vset.pattern.permute.xlu0 28
    %514 = vperm.xlu0 %513, %v53
    %v515 = vpop.permute.xlu0 %514
    %v517 = vperm.slane %v508, 0
    %v518 = vadd.f32 %v511, %v517
    %v519 = vadd.f32 %v515, %v517
    %v520 = vmax.f32 %v504, %v518
    %v521 = vmax.f32 %v505, %v519
    %v522 = vmin.f32 %v506, %v518
    %v523 = vmin.f32 %v507, %v519
    %v524 = vld [vmem:[#allocation7 + $0x1d] sm:$0x1]
    %525 = vset.pattern.permute.xlu0 29
    %526 = vperm.xlu0 %525, %v52
    %v527 = vpop.permute.xlu0 %526
    %529 = vset.pattern.permute.xlu0 29
    %530 = vperm.xlu0 %529, %v53
    %v531 = vpop.permute.xlu0 %530
    %v533 = vperm.slane %v524, 0
    %v534 = vadd.f32 %v527, %v533
    %v535 = vadd.f32 %v531, %v533
    %v536 = vmax.f32 %v520, %v534
    %v537 = vmax.f32 %v521, %v535
    %v538 = vmin.f32 %v522, %v534
    %v539 = vmin.f32 %v523, %v535
    %v540 = vld [vmem:[#allocation7 + $0x1e] sm:$0x1]
    %541 = vset.pattern.permute.xlu0 30
    %542 = vperm.xlu0 %541, %v52
    %v543 = vpop.permute.xlu0 %542
    %545 = vset.pattern.permute.xlu0 30
    %546 = vperm.xlu0 %545, %v53
    %v547 = vpop.permute.xlu0 %546
    %v549 = vperm.slane %v540, 0
    %v550 = vadd.f32 %v543, %v549
    %v551 = vadd.f32 %v547, %v549
    %v552 = vmax.f32 %v536, %v550
    %v553 = vmax.f32 %v537, %v551
    %v554 = vmin.f32 %v538, %v550
    %v555 = vmin.f32 %v539, %v551
    %v556 = vld [vmem:[#allocation7 + $0x1f] sm:$0x1]
    %557 = vset.pattern.permute.xlu0 31
    %558 = vperm.xlu0 %557, %v52
    %v559 = vpop.permute.xlu0 %558
    %561 = vset.pattern.permute.xlu0 31
    %562 = vperm.xlu0 %561, %v53
    %v563 = vpop.permute.xlu0 %562
    %v565 = vperm.slane %v556, 0
    %v566 = vadd.f32 %v559, %v565
    %v567 = vadd.f32 %v563, %v565
    %v568 = vmax.f32 %v552, %v566
    %v569 = vmax.f32 %v553, %v567
    %v570 = vmin.f32 %v554, %v566
    %v571 = vmin.f32 %v555, %v567
    %572 = vst [vmem:[#allocation2] sm:$0xff] %v568
    %573 = vst [vmem:[#allocation2 + $0x8] sm:$0xff] %v569
    %574 = vst [vmem:[#allocation3] sm:$0xff] %v570
    %575 = vst [vmem:[#allocation3 + $0x8] sm:$0xff] %v571
    // Predicated region
    $region22: #{tpu_custom_call.1} parent=1 // pred_check
      %p576 = pneg %p44
    $region23: #{tpu_custom_call.1} parent=1 // pred_check_branch
      %578 = sbr.rel (%p576) target = $region25
    $region24: #{tpu_custom_call.1} parent=1 // pred_region
      %v579 = vld [vmem:[#allocation2] sm:$0xff]
      %v580 = vld [vmem:[#allocation2 + $0x8] sm:$0xff]
      %v581 = vld [vmem:[#allocation3] sm:$0xff]
      %v582 = vld [vmem:[#allocation3 + $0x8] sm:$0xff]
      %v583 = vadd.f32 %v579, %v581
      %v584 = vadd.f32 %v580, %v582
      %585 = vst [vmem:[#allocation9] sm:$0xff] %v583
      %586 = vst [vmem:[#allocation9 + $0x8] sm:$0xff] %v584
    $region25: #{tpu_custom_call.1} parent=1 // pred_fallthru
      _
    // Predicated region
    $region26: #{tpu_custom_call.1} parent=1 // pred_check
      _
    $region27: #{tpu_custom_call.1} parent=1 // pred_check_branch
      %588 = sbr.rel (0) target = $region29
    $region28: #{tpu_custom_call.1} parent=1 // pred_region
      %590 = vsyncadd [#allocation6], 0
      %s591 = sshll.u32 [#allocation9], 4
      %s592 = int_to_ptr.vmem [resolvable:$true] %s591
      %s593 = sshll.u32 %s2, 4
      %s594 = int_to_ptr.hbm [resolvable:$true] %s593
      %599 = dma.vmem_to_hbm [thread:$0]  %s592, 256, %s594, [#allocation6], 128, 128, 8
    $region29: #{tpu_custom_call.1} parent=1 // pred_fallthru
      _
    // Predicated region
    $region30: #{tpu_custom_call.1} parent=1 // pred_check
      _
    $region31: #{tpu_custom_call.1} parent=1 // pred_check_branch
      %601 = sbr.rel (0) target = $region33
    $region32: #{tpu_custom_call.1} parent=1 // pred_region
      %603 = dma.done [#allocation6], 256
    $region33: #{tpu_custom_call.1} parent=1 // pred_fallthru
      _
    %604 = vsyncpa [#allocation5], 1
    %605 = vsyncpa [#allocation8], 1
    %606 = vsyncpa [#allocation6], 1

</llo_original>
